<compile_context>
chip_gen: v7x
topology: tpu7x:2x2x1
jax: 0.10.0
libtpu: 0.0.40
codegen_flags: <defaults>
</compile_context>

<pallas_src>
import functools

import jax
import jax.numpy as jnp
from jax import lax
from jax.experimental import pallas as pl
from jax.experimental.pallas import tpu as pltpu


def _tacotron2_loss_kernel(mel_out_ref, mel_post_ref, mel_tgt_ref,
                           gate_out_ref, gate_tgt_ref,
                           mel_partial_ref, gate_partial_ref,
                           acc_ref, *, total_rows, tiles_per_core):
    c = pl.program_id(0)          # parallel (core) axis
    i = pl.program_id(1)          # reduction axis over row tiles
    tr, t = mel_out_ref.shape     # static tile dims

    @pl.when(i == 0)
    def _init():
        acc_ref[...] = jnp.zeros_like(acc_ref)

    # Narrow row-validity mask (tile_rows, 1): handles the partial last tile
    # and the clamped duplicate tile a core may see when tiles don't split
    # evenly.  Broadcast along lanes happens inside the select.
    logical_tile = c * tiles_per_core + i
    rows_valid = total_rows - logical_tile * tr         # traced, may be <= 0
    row_idx = lax.broadcasted_iota(jnp.int32, (tr, 1), 0)
    mask = row_idx < rows_valid

    mo = mel_out_ref[...].astype(jnp.float32)
    mp = mel_post_ref[...].astype(jnp.float32)
    mt = mel_tgt_ref[...].astype(jnp.float32)
    d0 = mo - mt
    d1 = mp - mt
    sq = jnp.where(mask, d0 * d0 + d1 * d1, 0.0)        # fused both MSE sums

    # Fold groups of 8 rows with pure VPU adds (vreg-aligned, layout-free
    # reshape); keep an (8, T) running partial in VMEM scratch.
    acc_ref[...] += sq.reshape(tr // 8, 8, t).sum(axis=0)

    @pl.when(i == tiles_per_core - 1)
    def _finalize():
        mel_partial_ref[0] = acc_ref[...]
        # Numerically stable BCE-with-logits: max(x,0) - x*z + log1p(exp(-|x|))
        x = gate_out_ref[...].astype(jnp.float32)
        z = gate_tgt_ref[...].astype(jnp.float32)
        bce = jnp.maximum(x, 0.0) - x * z + jnp.log1p(jnp.exp(-jnp.abs(x)))
        gate_partial_ref[...] = jnp.full(gate_partial_ref.shape, jnp.sum(bce),
                                         dtype=jnp.float32)


def tacotron2_loss(model_output, targets, *, tile_rows=None, num_splits=2):
    """model_output = (mel_out, mel_out_postnet, gate_out, _alignments)
       targets      = (mel_target, gate_target)
       mel_*  : (B, n_mel, T)      gate_* : (B, T) (any trailing shape)
    Returns (loss, mel_loss, gate_loss) like the PyTorch module.
    """
    mel_out, mel_out_postnet, gate_out, _ = model_output
    mel_target, gate_target = targets

    B, M, T = mel_out.shape
    R = B * M
    n_mel = B * M * T

    # Free reshapes; keep the source dtype (upcast happens inside the kernel).
    mo2 = mel_out.reshape(R, T)
    mp2 = mel_out_postnet.reshape(R, T)
    mt2 = mel_target.reshape(R, T)

    rows = R
    if rows < 8:   # degenerate tiny inputs: make an (8, T) block valid
        pad = 8 - rows
        mo2 = jnp.pad(mo2, ((0, pad), (0, 0)))
        mp2 = jnp.pad(mp2, ((0, pad), (0, 0)))
        mt2 = jnp.pad(mt2, ((0, pad), (0, 0)))
        rows = 8

    # gate: 2-D batch-major view (equivalent to the reference .view(-1, 1)).
    g_o = gate_out.reshape(gate_out.shape[0], -1)
    g_t = gate_target.reshape(gate_target.shape[0], -1)
    n_gate = g_o.size

    mel_item = jnp.dtype(mel_out.dtype).itemsize
    gate_item = jnp.dtype(gate_out.dtype).itemsize

    # Row tile: multiple of 8, ~2 MiB of SOURCE bytes per input tile.  With
    # double-buffering of the 3 mel inputs that is ~12 MiB of streamed VMEM,
    # well under the 48 MiB limit on every chip, and large enough that the
    # ~0.35 us per-step pipeline overhead is <10% of the per-step DMA time.
    if tile_rows is None:
        tile_rows = (2 * 1024 * 1024) // max(T * mel_item, 1)
    tr = max(8, (min(rows, tile_rows) // 8) * 8)

    total_tiles = int(pl.cdiv(rows, tr))
    num_splits = max(1, min(num_splits, total_tiles))
    tiles_per_core = int(pl.cdiv(total_tiles, num_splits))
    grid = (num_splits, tiles_per_core)

    def mel_map(c, i):
        # Clamp so DMA block starts always stay in bounds; the kernel masks
        # the (zero-contribution) duplicate rows.
        return (jnp.minimum(c * tiles_per_core + i, total_tiles - 1), 0)

    gate_map = lambda c, i: (0, 0)

    kernel = functools.partial(_tacotron2_loss_kernel,
                               total_rows=R, tiles_per_core=tiles_per_core)

    cost = pl.CostEstimate(
        flops=7 * n_mel + 6 * n_gate,
        transcendentals=2 * n_gate,
        bytes_accessed=3 * n_mel * mel_item + 2 * n_gate * gate_item)

    mel_partial, gate_partial = pl.pallas_call(
        kernel,
        out_shape=(jax.ShapeDtypeStruct((num_splits, 8, T), jnp.float32),
                   jax.ShapeDtypeStruct((num_splits, 8, 128), jnp.float32)),
        grid_spec=pltpu.PrefetchScalarGridSpec(
            num_scalar_prefetch=0,
            grid=grid,
            in_specs=[
                pl.BlockSpec((tr, T), mel_map),
                pl.BlockSpec((tr, T), mel_map),
                pl.BlockSpec((tr, T), mel_map),
                pl.BlockSpec(g_o.shape, gate_map),
                pl.BlockSpec(g_t.shape, gate_map),
            ],
            out_specs=(pl.BlockSpec((1, 8, T), lambda c, i: (c, 0, 0)),
                       pl.BlockSpec((1, 8, 128), lambda c, i: (c, 0, 0))),
            scratch_shapes=[pltpu.VMEM((8, T), jnp.float32)],
        ),
        compiler_params=pltpu.CompilerParams(
            dimension_semantics=("parallel", "arbitrary"),
            vmem_limit_bytes=48 * 1024 * 1024),
        cost_estimate=cost,
    )(mo2, mp2, mt2, g_o, g_t)

    mel_loss = jnp.sum(mel_partial) / n_mel
    gate_loss = gate_partial[0, 0, 0] / n_gate   # every core holds the same sum
    loss = mel_loss + gate_loss
    return loss, mel_loss, gate_loss


def _reference_loss(model_output, targets):
    mel_out, mel_out_postnet, gate_out, _ = model_output
    mel_target, gate_target = targets
    mo = mel_out.astype(jnp.float32)
    mp = mel_out_postnet.astype(jnp.float32)
    mt = mel_target.astype(jnp.float32)
    mel_loss = jnp.mean((mo - mt) ** 2) + jnp.mean((mp - mt) ** 2)
    x = gate_out.reshape(-1).astype(jnp.float32)
    z = gate_target.reshape(-1).astype(jnp.float32)
    bce = jnp.maximum(x, 0.0) - x * z + jnp.log1p(jnp.exp(-jnp.abs(x)))
    gate_loss = jnp.mean(bce)
    return mel_loss + gate_loss, mel_loss, gate_loss


if __name__ == "__main__":
    key = jax.random.PRNGKey(0)
    k1, k2, k3, k4, k5 = jax.random.split(key, 5)

    B, M, T = 2, 13, 24   # small; R = 26 rows exercises ragged/masked tiling

    mel_out = jax.random.normal(k1, (B, M, T), dtype=jnp.float32)
    mel_out_postnet = jax.random.normal(k2, (B, M, T), dtype=jnp.float32)
    gate_out = jax.random.normal(k3, (B, T), dtype=jnp.float32)
    alignments = jnp.zeros((B, T, T), dtype=jnp.float32)  # unused by the loss

    mel_target = jax.random.normal(k4, (B, M, T), dtype=jnp.float32)
    gate_target = (jax.random.uniform(k5, (B, T)) > 0.5).astype(jnp.float32)

    model_output = (mel_out, mel_out_postnet, gate_out, alignments)
    targets = (mel_target, gate_target)

    # Default (auto) tiling, and a forced small tile that exercises the
    # multi-tile / multi-split / masked-edge paths at this toy size.
    out_a = tacotron2_loss(model_output, targets)
    out_b = tacotron2_loss(model_output, targets, tile_rows=8)
    jax.block_until_ready((out_a, out_b))

    ref = _reference_loss(model_output, targets)
    for got in (out_a, out_b):
        for g, r in zip(got, ref):
            assert jnp.allclose(g, r, atol=1e-5, rtol=1e-5), (g, r)

    # bf16 inputs: exercises the in-kernel up-cast (HBM stays at bf16).
    model_output_bf16 = (mel_out.astype(jnp.bfloat16),
                         mel_out_postnet.astype(jnp.bfloat16),
                         gate_out.astype(jnp.bfloat16),
                         alignments)
    targets_bf16 = (mel_target.astype(jnp.bfloat16),
                    gate_target.astype(jnp.bfloat16))
    out_c = tacotron2_loss(model_output_bf16, targets_bf16)
    jax.block_until_ready(out_c)
    ref_c = _reference_loss(model_output_bf16, targets_bf16)
    for g, r in zip(out_c, ref_c):
        assert jnp.allclose(g, r, atol=1e-4, rtol=1e-4), (g, r)

    print("KERNEL_OK")
</pallas_src>

<mosaic_0001>
module attributes {stable_mosaic.version = 11 : i64} {
  func.func @_tacotron2_loss_kernel(%arg0: i32, %arg1: i32, %arg2: memref<24x24xf32, #tpu.memory_space<vmem>>, %arg3: memref<24x24xf32, #tpu.memory_space<vmem>>, %arg4: memref<24x24xf32, #tpu.memory_space<vmem>>, %arg5: memref<2x24xf32, #tpu.memory_space<vmem>>, %arg6: memref<2x24xf32, #tpu.memory_space<vmem>>, %arg7: memref<1x8x24xf32, #tpu.memory_space<vmem>>, %arg8: memref<1x8x128xf32, #tpu.memory_space<vmem>>, %arg9: memref<8x24xf32, #tpu.memory_space<vmem>>) attributes {dimension_semantics = [#tpu.dimension_semantics<parallel>, #tpu.dimension_semantics<arbitrary>], iteration_bounds = array<i64: 2, 1>, scalar_prefetch = 0 : i64, scratch_operands = 1 : i64, tpu.core_type = #tpu.core_type<tc>, window_params = [{transform_indices = @transform_0, window_bounds = array<i64: 24, 24>}, {transform_indices = @transform_1, window_bounds = array<i64: 24, 24>}, {transform_indices = @transform_2, window_bounds = array<i64: 24, 24>}, {pipeline_mode = #tpu.pipeline_mode<synchronous>, transform_indices = @transform_3, window_bounds = array<i64: 2, 24>}, {pipeline_mode = #tpu.pipeline_mode<synchronous>, transform_indices = @transform_4, window_bounds = array<i64: 2, 24>}, {transform_indices = @transform_5, window_bounds = array<i64: 1, 8, 24>}, {transform_indices = @transform_6, window_bounds = array<i64: 1, 8, 128>}]} {
    %c0_i32 = arith.constant 0 : i32
    %0 = arith.cmpi eq, %arg1, %c0_i32 : i32
    %1 = arith.extui %0 : i1 to i32
    %c0_i32_0 = arith.constant 0 : i32
    %2 = arith.cmpi ne, %1, %c0_i32_0 : i32
    scf.if %2 {
      %cst_13 = arith.constant 0.000000e+00 : f32
      %30 = vector.broadcast %cst_13 : f32 to vector<8x24xf32>
      %c0_14 = arith.constant 0 : index
      %c0_15 = arith.constant 0 : index
      %31 = vector.load %arg9[%c0_14, %c0_15] : memref<8x24xf32, #tpu.memory_space<vmem>>, vector<8x24xf32>
      tpu.vector_store %arg9[%c0_14, %c0_15], %30 {strides = array<i32>} : memref<8x24xf32, #tpu.memory_space<vmem>>, vector<8x24xf32>,
    } else {
    }
    %c1_i32 = arith.constant 1 : i32
    %3 = arith.muli %arg0, %c1_i32 : i32
    %4 = arith.addi %3, %arg1 : i32
    %c24_i32 = arith.constant 24 : i32
    %5 = arith.muli %4, %c24_i32 : i32
    %c26_i32 = arith.constant 26 : i32
    %6 = arith.subi %c26_i32, %5 : i32
    %7 = tpu.iota {dimensions = array<i32: 0>} : vector<24x1xi32>
    %8 = vector.broadcast %6 : i32 to vector<24x1xi32>
    %9 = arith.cmpi slt, %7, %8 : vector<24x1xi32>
    %c0 = arith.constant 0 : index
    %c0_1 = arith.constant 0 : index
    %10 = vector.load %arg2[%c0, %c0_1] : memref<24x24xf32, #tpu.memory_space<vmem>>, vector<24x24xf32>
    %c0_2 = arith.constant 0 : index
    %c0_3 = arith.constant 0 : index
    %11 = vector.load %arg3[%c0_2, %c0_3] : memref<24x24xf32, #tpu.memory_space<vmem>>, vector<24x24xf32>
    %c0_4 = arith.constant 0 : index
    %c0_5 = arith.constant 0 : index
    %12 = vector.load %arg4[%c0_4, %c0_5] : memref<24x24xf32, #tpu.memory_space<vmem>>, vector<24x24xf32>
    %13 = arith.subf %10, %12 : vector<24x24xf32>
    %14 = arith.subf %11, %12 : vector<24x24xf32>
    %15 = arith.mulf %13, %13 : vector<24x24xf32>
    %16 = arith.mulf %14, %14 : vector<24x24xf32>
    %17 = arith.addf %15, %16 : vector<24x24xf32>
    %cst = arith.constant 0.000000e+00 : f32
    %18 = vector.shape_cast %9 : vector<24x1xi1> to vector<24x1xi1>
    %19 = vector.broadcast %18 : vector<24x1xi1> to vector<24x24xi1>
    %20 = vector.broadcast %cst : f32 to vector<24x24xf32>
    %21 = arith.select %19, %17, %20 : vector<24x24xi1>, vector<24x24xf32>
    %c0_6 = arith.constant 0 : index
    %c0_7 = arith.constant 0 : index
    %22 = vector.load %arg9[%c0_6, %c0_7] : memref<8x24xf32, #tpu.memory_space<vmem>>, vector<8x24xf32>
    %23 = vector.shape_cast %21 : vector<24x24xf32> to vector<3x8x24xf32>
    %cst_8 = arith.constant dense<0.000000e+00> : vector<8x24xf32>
    %24 = vector.multi_reduction <add>, %23, %cst_8 [0] : vector<3x8x24xf32> to vector<8x24xf32>
    %25 = arith.addf %22, %24 : vector<8x24xf32>
    %c0_9 = arith.constant 0 : index
    %c0_10 = arith.constant 0 : index
    %26 = vector.load %arg9[%c0_9, %c0_10] : memref<8x24xf32, #tpu.memory_space<vmem>>, vector<8x24xf32>
    tpu.vector_store %arg9[%c0_9, %c0_10], %25 {strides = array<i32>} : memref<8x24xf32, #tpu.memory_space<vmem>>, vector<8x24xf32>,
    %c0_i32_11 = arith.constant 0 : i32
    %27 = arith.cmpi eq, %arg1, %c0_i32_11 : i32
    %28 = arith.extui %27 : i1 to i32
    %c0_i32_12 = arith.constant 0 : i32
    %29 = arith.cmpi ne, %28, %c0_i32_12 : i32
    scf.if %29 {
      %c0_13 = arith.constant 0 : index
      %c0_14 = arith.constant 0 : index
      %30 = vector.load %arg9[%c0_13, %c0_14] : memref<8x24xf32, #tpu.memory_space<vmem>>, vector<8x24xf32>
      %c0_15 = arith.constant 0 : index
      %c0_16 = arith.constant 0 : index
      %c0_17 = arith.constant 0 : index
      %31 = vector.load %arg7[%c0_15, %c0_16, %c0_17] : memref<1x8x24xf32, #tpu.memory_space<vmem>>, vector<1x8x24xf32>
      %32 = vector.shape_cast %31 : vector<1x8x24xf32> to vector<8x24xf32>
      %33 = vector.shape_cast %30 : vector<8x24xf32> to vector<1x8x24xf32>
      tpu.vector_store %arg7[%c0_15, %c0_16, %c0_17], %33 {strides = array<i32>} : memref<1x8x24xf32, #tpu.memory_space<vmem>>, vector<1x8x24xf32>,
      %c0_18 = arith.constant 0 : index
      %c0_19 = arith.constant 0 : index
      %34 = vector.load %arg5[%c0_18, %c0_19] : memref<2x24xf32, #tpu.memory_space<vmem>>, vector<2x24xf32>
      %c0_20 = arith.constant 0 : index
      %c0_21 = arith.constant 0 : index
      %35 = vector.load %arg6[%c0_20, %c0_21] : memref<2x24xf32, #tpu.memory_space<vmem>>, vector<2x24xf32>
      %cst_22 = arith.constant 0.000000e+00 : f32
      %36 = vector.broadcast %cst_22 : f32 to vector<2x24xf32>
      %37 = arith.maximumf %34, %36 : vector<2x24xf32>
      %38 = arith.mulf %34, %35 : vector<2x24xf32>
      %39 = arith.subf %37, %38 : vector<2x24xf32>
      %40 = math.absf %34 : vector<2x24xf32>
      %cst_23 = arith.constant 0.000000e+00 : f32
      %41 = vector.broadcast %cst_23 : f32 to vector<2x24xf32>
      %42 = arith.subf %41, %40 : vector<2x24xf32>
      %43 = math.exp %42 : vector<2x24xf32>
      %44 = math.log1p %43 : vector<2x24xf32>
      %45 = arith.addf %39, %44 : vector<2x24xf32>
      %46 = vector.shape_cast %45 : vector<2x24xf32> to vector<1x2x24xf32>
      %cst_24 = arith.constant dense<0.000000e+00> : vector<1xf32>
      %47 = vector.multi_reduction <add>, %46, %cst_24 [1, 2] : vector<1x2x24xf32> to vector<1xf32>
      %48 = vector.shape_cast %47 : vector<1xf32> to vector<1x1x1xf32>
      %49 = vector.extract %48[0, 0, 0] : f32 from vector<1x1x1xf32>
      %50 = vector.broadcast %49 : f32 to vector<1x8x128xf32>
      %c0_25 = arith.constant 0 : index
      %c0_26 = arith.constant 0 : index
      %c0_27 = arith.constant 0 : index
      %51 = vector.load %arg8[%c0_25, %c0_26, %c0_27] : memref<1x8x128xf32, #tpu.memory_space<vmem>>, vector<1x8x128xf32>
      tpu.vector_store %arg8[%c0_25, %c0_26, %c0_27], %50 {strides = array<i32>} : memref<1x8x128xf32, #tpu.memory_space<vmem>>, vector<1x8x128xf32>,
    } else {
    }
    return
  }
  func.func @transform_0(%arg0: i32, %arg1: i32) -> (i32, i32) {
    %c1_i32 = arith.constant 1 : i32
    %0 = arith.muli %arg0, %c1_i32 : i32
    %1 = arith.addi %0, %arg1 : i32
    %c1_i32_0 = arith.constant 1 : i32
    %2 = arith.minsi %1, %c1_i32_0 : i32
    %c0_i32 = arith.constant 0 : i32
    %c0_i32_1 = arith.constant 0 : i32
    return %2, %c0_i32 : i32, i32
  }
  func.func @transform_1(%arg0: i32, %arg1: i32) -> (i32, i32) {
    %c1_i32 = arith.constant 1 : i32
    %0 = arith.muli %arg0, %c1_i32 : i32
    %1 = arith.addi %0, %arg1 : i32
    %c1_i32_0 = arith.constant 1 : i32
    %2 = arith.minsi %1, %c1_i32_0 : i32
    %c0_i32 = arith.constant 0 : i32
    %c0_i32_1 = arith.constant 0 : i32
    return %2, %c0_i32 : i32, i32
  }
  func.func @transform_2(%arg0: i32, %arg1: i32) -> (i32, i32) {
    %c1_i32 = arith.constant 1 : i32
    %0 = arith.muli %arg0, %c1_i32 : i32
    %1 = arith.addi %0, %arg1 : i32
    %c1_i32_0 = arith.constant 1 : i32
    %2 = arith.minsi %1, %c1_i32_0 : i32
    %c0_i32 = arith.constant 0 : i32
    %c0_i32_1 = arith.constant 0 : i32
    return %2, %c0_i32 : i32, i32
  }
  func.func @transform_3(%arg0: i32, %arg1: i32) -> (i32, i32) {
    %c0_i32 = arith.constant 0 : i32
    %c0_i32_0 = arith.constant 0 : i32
    %c0_i32_1 = arith.constant 0 : i32
    return %c0_i32, %c0_i32_0 : i32, i32
  }
  func.func @transform_4(%arg0: i32, %arg1: i32) -> (i32, i32) {
    %c0_i32 = arith.constant 0 : i32
    %c0_i32_0 = arith.constant 0 : i32
    %c0_i32_1 = arith.constant 0 : i32
    return %c0_i32, %c0_i32_0 : i32, i32
  }
  func.func @transform_5(%arg0: i32, %arg1: i32) -> (i32, i32, i32) {
    %c0_i32 = arith.constant 0 : i32
    %c0_i32_0 = arith.constant 0 : i32
    %c0_i32_1 = arith.constant 0 : i32
    return %arg0, %c0_i32, %c0_i32_0 : i32, i32, i32
  }
  func.func @transform_6(%arg0: i32, %arg1: i32) -> (i32, i32, i32) {
    %c0_i32 = arith.constant 0 : i32
    %c0_i32_0 = arith.constant 0 : i32
    %c0_i32_1 = arith.constant 0 : i32
    return %arg0, %c0_i32, %c0_i32_0 : i32, i32, i32
  }
}

</mosaic_0001>

<llo_original>
// kernel: tpu_custom_call.1
$region0: #{tpu_custom_call.1}
  #allocation0 [shape = 'u32[]', space=smem, size = 0x4, offset = 0x4, fixed_abs, tag = 'smem constant byte address 0x4 - core index']
  #allocation1 [shape = 'u32[144,128]{1,0:T(1,128)}', space=vmem, size = 0x12000, scoped, tag = 'internal scratch']
  #allocation2 [shape = 'f32[8,24]{1,0:T(8,128)}', space=vmem, size = 0x1000, scoped, tag = 'scratch operand']
  %s0 = inlined_call_operand.vmem [shape: f32[26,24], index: 0, kind: input, shape index: {}]
  %s1 = inlined_call_operand.vmem [shape: f32[26,24], index: 1, kind: input, shape index: {}]
  %s2 = inlined_call_operand.vmem [shape: f32[26,24], index: 2, kind: input, shape index: {}]
  %s3 = inlined_call_operand.vmem [shape: f32[2,24], index: 3, kind: input, shape index: {}]
  %s4 = inlined_call_operand.vmem [shape: f32[2,24], index: 4, kind: input, shape index: {}]
  %s5 = inlined_call_operand.hbm [shape: f32[2,8,24], index: 5, kind: output, shape index: {0}]
  %s6 = inlined_call_operand.hbm [shape: f32[2,8,128], index: 6, kind: output, shape index: {1}]
  %7 = xla_tuple %s5, %s6
  %s8 = sld [smem:[#allocation0]]
  $region69: #{tpu_custom_call.1} parent=0
    _
  %s10 = ssub.s32 1, %s8
  %s11 = scalar_select 0, %s10, %s8
  $region1: #{tpu_custom_call.1} parent=0
    #allocation3 [shape = 'u8[8192]{0}', space=vmem, size = 0x2000, scoped, tag = 'output window, operand 0']
    #allocation4 [shape = 's32[2]{0}', space=sflag, size = 0x8, scoped, tag = 'scoped memory for tpu_custom_call.1']
    #allocation5 [shape = 'u8[8192]{0}', space=vmem, size = 0x2000, scoped, tag = 'output window, operand 1']
    #allocation6 [shape = 's32[2]{0}', space=sflag, size = 0x8, scoped, tag = 'scoped memory for tpu_custom_call.1']
    %12 = vsyncpa [#allocation4], 0
    %s13 = scalar_lea.sflag [#allocation4], 1
    %14 = vsyncpa %s13, 0
    %15 = vsyncpa [#allocation6], 0
    %s16 = scalar_lea.sflag [#allocation6], 1
    %17 = vsyncpa %s16, 0
    loop: start=0, step=1, limit=4
    $region2: #{tpu_custom_call.1} parent=1 // loop_pre_header
      _
    $region3: #{tpu_custom_call.1} parent=1 // loop_header
      %s19 = sphi 0, %s23
      %p20 = scmp.ge.s32.totalorder %s19, 4
      %s26 = sphi 0, %s38
      %s27 = sphi 0, %s34
      %s28 = sphi 0, %s26
      %s29 = sphi 0, %s27
      %s30 = sphi 0, %s28
      %s31 = sphi 0, %s29
      %s47 = sphi 0, %s49
      %s50 = sphi 0, %s47
      %s51 = sphi 0, %s50
      %s67 = sphi 0, %s51
      %s79 = sphi 0, %s81
      %s82 = sphi 0, %s79
      %s83 = sphi 0, %s82
      %s99 = sphi 0, %s83
      %s111 = sphi 0, %s113
      %s114 = sphi 0, %s111
      %s115 = sphi 0, %s114
      %s131 = sphi 0, %s115
      %s135 = sphi 0, %s135
      %s137 = sphi 0, %s135
      %s138 = sphi 0, %s137
      %s152 = sphi 0, %s138
      %s156 = sphi 0, %s156
      %s158 = sphi 0, %s156
      %s159 = sphi 0, %s158
      %s173 = sphi 0, %s159
      %s179 = sphi 0, %s181
      %s182 = sphi 0, %s179
      %s183 = sphi 0, %s182
      %s199 = sphi 0, %s183
      %s205 = sphi 0, %s207
      %s208 = sphi 0, %s205
      %s209 = sphi 0, %s208
      %s225 = sphi 0, %s209
    $region4: #{tpu_custom_call.1} parent=1 // loop_header_branch
      %22 = sbr.rel (%p20) target = $region8
    $region5: #{tpu_custom_call.1} parent=1 // loop_body
      %s24 = ssub.s32 %s19, 1
      %s25 = ssub.s32 %s19, 2
      %s32 = sadd.s32 1, %s27
      %p33 = scmp.ge.s32.totalorder %s32, 1
      %s34 = scalar_select %p33, 0, %s32
      %s35 = sadd.s32 1, %s26
      %s36 = scalar_select %p33, %s35, %s26
      %p37 = scmp.ge.s32.totalorder %s36, 2
      %s38 = scalar_select %p37, 0, %s36
      %s39 = sadd.s32 %s26, %s27
      %p40 = scmp.lt.s32.totalorder %s39, 1
      %s41 = scalar_select %p40, %s39, 1
      %s42 = sadd.s32 %s38, %s34
      %p43 = scmp.lt.s32.totalorder %s42, 1
      %s44 = scalar_select %p43, %s42, 1
      %s45 = ssub.s32 %s41, %s44
      %p46 = scmp.eq.s32.totalorder %s45, 0
      %s48 = sadd.s32 %s47, 1
      %s49 = scalar_select %p46, %s47, %s48
      %p52 = pneg %p46
      %p53 = scmp.eq.s32.totalorder %s19, 1
      %p54 = por %p52, %p53
      %p55 = scmp.ne.s32.totalorder %s47, %s50
      %p56 = scmp.eq.s32.totalorder %s19, 0
      %p57 = por %p55, %p56
      %p58 = scmp.ne.s32.totalorder %s47, %s50
      %p59 = scmp.eq.s32.totalorder %s24, 1
      %p60 = por %p58, %p59
      %p61 = scmp.ne.s32.totalorder %s50, %s51
      %p62 = scmp.eq.s32.totalorder %s24, 0
      %p63 = por %p61, %p62
      %p64 = scmp.ne.s32.totalorder %s50, %s51
      %p65 = scmp.eq.s32.totalorder %s25, 1
      %p66 = por %p64, %p65
      %p68 = scmp.ne.s32.totalorder %s51, %s67
      %p69 = scmp.eq.s32.totalorder %s25, 0
      %p70 = por %p68, %p69
      %s71 = sadd.s32 %s26, %s27
      %p72 = scmp.lt.s32.totalorder %s71, 1
      %s73 = scalar_select %p72, %s71, 1
      %s74 = sadd.s32 %s38, %s34
      %p75 = scmp.lt.s32.totalorder %s74, 1
      %s76 = scalar_select %p75, %s74, 1
      %s77 = ssub.s32 %s73, %s76
      %p78 = scmp.eq.s32.totalorder %s77, 0
      %s80 = sadd.s32 %s79, 1
      %s81 = scalar_select %p78, %s79, %s80
      %p84 = pneg %p78
      %p85 = scmp.eq.s32.totalorder %s19, 1
      %p86 = por %p84, %p85
      %p87 = scmp.ne.s32.totalorder %s79, %s82
      %p88 = scmp.eq.s32.totalorder %s19, 0
      %p89 = por %p87, %p88
      %p90 = scmp.ne.s32.totalorder %s79, %s82
      %p91 = scmp.eq.s32.totalorder %s24, 1
      %p92 = por %p90, %p91
      %p93 = scmp.ne.s32.totalorder %s82, %s83
      %p94 = scmp.eq.s32.totalorder %s24, 0
      %p95 = por %p93, %p94
      %p96 = scmp.ne.s32.totalorder %s82, %s83
      %p97 = scmp.eq.s32.totalorder %s25, 1
      %p98 = por %p96, %p97
      %p100 = scmp.ne.s32.totalorder %s83, %s99
      %p101 = scmp.eq.s32.totalorder %s25, 0
      %p102 = por %p100, %p101
      %s103 = sadd.s32 %s26, %s27
      %p104 = scmp.lt.s32.totalorder %s103, 1
      %s105 = scalar_select %p104, %s103, 1
      %s106 = sadd.s32 %s38, %s34
      %p107 = scmp.lt.s32.totalorder %s106, 1
      %s108 = scalar_select %p107, %s106, 1
      %s109 = ssub.s32 %s105, %s108
      %p110 = scmp.eq.s32.totalorder %s109, 0
      %s112 = sadd.s32 %s111, 1
      %s113 = scalar_select %p110, %s111, %s112
      %p116 = pneg %p110
      %p117 = scmp.eq.s32.totalorder %s19, 1
      %p118 = por %p116, %p117
      %p119 = scmp.ne.s32.totalorder %s111, %s114
      %p120 = scmp.eq.s32.totalorder %s19, 0
      %p121 = por %p119, %p120
      %p122 = scmp.ne.s32.totalorder %s111, %s114
      %p123 = scmp.eq.s32.totalorder %s24, 1
      %p124 = por %p122, %p123
      %p125 = scmp.ne.s32.totalorder %s114, %s115
      %p126 = scmp.eq.s32.totalorder %s24, 0
      %p127 = por %p125, %p126
      %p128 = scmp.ne.s32.totalorder %s114, %s115
      %p129 = scmp.eq.s32.totalorder %s25, 1
      %p130 = por %p128, %p129
      %p132 = scmp.ne.s32.totalorder %s115, %s131
      %p133 = scmp.eq.s32.totalorder %s25, 0
      %p134 = por %p132, %p133
      %s136 = sadd.s32 %s135, 1
      %p139 = scmp.eq.s32.totalorder %s19, 1
      %p140 = scmp.ne.s32.totalorder %s135, %s137
      %p141 = scmp.eq.s32.totalorder %s19, 0
      %p142 = por %p140, %p141
      %p143 = scmp.ne.s32.totalorder %s135, %s137
      %p144 = scmp.eq.s32.totalorder %s24, 1
      %p145 = por %p143, %p144
      %p146 = scmp.ne.s32.totalorder %s137, %s138
      %p147 = scmp.eq.s32.totalorder %s24, 0
      %p148 = por %p146, %p147
      %p149 = scmp.ne.s32.totalorder %s137, %s138
      %p150 = scmp.eq.s32.totalorder %s25, 1
      %p151 = por %p149, %p150
      %p153 = scmp.ne.s32.totalorder %s138, %s152
      %p154 = scmp.eq.s32.totalorder %s25, 0
      %p155 = por %p153, %p154
      %s157 = sadd.s32 %s156, 1
      %p160 = scmp.eq.s32.totalorder %s19, 1
      %p161 = scmp.ne.s32.totalorder %s156, %s158
      %p162 = scmp.eq.s32.totalorder %s19, 0
      %p163 = por %p161, %p162
      %p164 = scmp.ne.s32.totalorder %s156, %s158
      %p165 = scmp.eq.s32.totalorder %s24, 1
      %p166 = por %p164, %p165
      %p167 = scmp.ne.s32.totalorder %s158, %s159
      %p168 = scmp.eq.s32.totalorder %s24, 0
      %p169 = por %p167, %p168
      %p170 = scmp.ne.s32.totalorder %s158, %s159
      %p171 = scmp.eq.s32.totalorder %s25, 1
      %p172 = por %p170, %p171
      %p174 = scmp.ne.s32.totalorder %s159, %s173
      %p175 = scmp.eq.s32.totalorder %s25, 0
      %p176 = por %p174, %p175
      %s177 = ssub.s32 %s26, %s38
      %p178 = scmp.eq.s32.totalorder %s177, 0
      %s180 = sadd.s32 %s179, 1
      %s181 = scalar_select %p178, %s179, %s180
      %p184 = pneg %p178
      %p185 = scmp.eq.s32.totalorder %s19, 1
      %p186 = por %p184, %p185
      %p187 = scmp.ne.s32.totalorder %s179, %s182
      %p188 = scmp.eq.s32.totalorder %s19, 0
      %p189 = por %p187, %p188
      %p190 = scmp.ne.s32.totalorder %s179, %s182
      %p191 = scmp.eq.s32.totalorder %s24, 1
      %p192 = por %p190, %p191
      %p193 = scmp.ne.s32.totalorder %s182, %s183
      %p194 = scmp.eq.s32.totalorder %s24, 0
      %p195 = por %p193, %p194
      %p196 = scmp.ne.s32.totalorder %s182, %s183
      %p197 = scmp.eq.s32.totalorder %s25, 1
      %p198 = por %p196, %p197
      %p200 = scmp.ne.s32.totalorder %s183, %s199
      %p201 = scmp.eq.s32.totalorder %s25, 0
      %p202 = por %p200, %p201
      %s203 = ssub.s32 %s26, %s38
      %p204 = scmp.eq.s32.totalorder %s203, 0
      %s206 = sadd.s32 %s205, 1
      %s207 = scalar_select %p204, %s205, %s206
      %p210 = pneg %p204
      %p211 = scmp.eq.s32.totalorder %s19, 1
      %p212 = por %p210, %p211
      %p213 = scmp.ne.s32.totalorder %s205, %s208
      %p214 = scmp.eq.s32.totalorder %s19, 0
      %p215 = por %p213, %p214
      %p216 = scmp.ne.s32.totalorder %s205, %s208
      %p217 = scmp.eq.s32.totalorder %s24, 1
      %p218 = por %p216, %p217
      %p219 = scmp.ne.s32.totalorder %s208, %s209
      %p220 = scmp.eq.s32.totalorder %s24, 0
      %p221 = por %p219, %p220
      %p222 = scmp.ne.s32.totalorder %s208, %s209
      %p223 = scmp.eq.s32.totalorder %s25, 1
      %p224 = por %p222, %p223
      %p226 = scmp.ne.s32.totalorder %s209, %s225
      %p227 = scmp.eq.s32.totalorder %s25, 0
      %p228 = por %p226, %p227
      %p229 = scmp.le.s32.totalorder 1, %s19
      %p230 = scmp.lt.s32.totalorder %s19, 3
      %p231 = pnand %p229, %p230
      %p232 = pneg %p231
      // Predicated region
      $region9: #{tpu_custom_call.1} parent=5 // pred_check
        _
      $region10: #{tpu_custom_call.1} parent=5 // pred_check_branch
        %234 = sbr.rel (%p231) target = $region12
      $region11: #{tpu_custom_call.1} parent=5 // pred_region
        %s235 = ssub.s32 %s19, 1
        // Predicated region
        $region13: #{tpu_custom_call.1} parent=11 // pred_check
          %p236 = pneg %p148
        $region14: #{tpu_custom_call.1} parent=11 // pred_check_branch
          %238 = sbr.rel (%p236) target = $region16
        $region15: #{tpu_custom_call.1} parent=11 // pred_region
          _
        $region16: #{tpu_custom_call.1} parent=11 // pred_fallthru
          _
        // Predicated region
        $region17: #{tpu_custom_call.1} parent=11 // pred_check
          %p239 = pneg %p169
        $region18: #{tpu_custom_call.1} parent=11 // pred_check_branch
          %241 = sbr.rel (%p239) target = $region20
        $region19: #{tpu_custom_call.1} parent=11 // pred_region
          _
        $region20: #{tpu_custom_call.1} parent=11 // pred_fallthru
          _
      $region12: #{tpu_custom_call.1} parent=5 // pred_fallthru
        _
      %p242 = scmp.lt.s32.totalorder %s19, 2
      // Predicated region
      $region21: #{tpu_custom_call.1} parent=5 // pred_check
        %p243 = pneg %p242
      $region22: #{tpu_custom_call.1} parent=5 // pred_check_branch
        %245 = sbr.rel (%p243) target = $region24
      $region23: #{tpu_custom_call.1} parent=5 // pred_region
        // Predicated region
        $region25: #{tpu_custom_call.1} parent=23 // pred_check
          %p246 = pneg %p57
        $region26: #{tpu_custom_call.1} parent=23 // pred_check_branch
          %248 = sbr.rel (%p246) target = $region28
        $region27: #{tpu_custom_call.1} parent=23 // pred_region
          %s249 = sadd.s32 %s26, %s27
          %p250 = scmp.lt.s32.totalorder %s249, 1
          %s251 = scalar_select %p250, %s249, 1
          %s252 = smul.u32 3, %s251
          %s253 = ssub.s32 4, %s252
          %p254 = scmp.lt.s32.totalorder %s253, 3
          %s255 = scalar_select %p254, %s253, 3
          %s256 = smul.u32 128, %s255
          %p257 = scmp.lt.s32.totalorder %s252, 3
          %s258 = scalar_select %p257, %s252, 3
          %s259 = smul.addr %s258, 8
          %s260 = scalar_lea.vmem %s0, %s259
          %s261 = sadd.s32 %s26, %s27
          %p262 = scmp.lt.s32.totalorder %s261, 1
          %s263 = scalar_select %p262, %s261, 1
          %s264 = smul.u32 3, %s263
          %s265 = ssub.s32 4, %s264
          %p266 = scmp.lt.s32.totalorder %s265, 3
          %s267 = scalar_select %p266, %s265, 3
          %s268 = smul.u32 128, %s267
        $region28: #{tpu_custom_call.1} parent=23 // pred_fallthru
          _
        // Predicated region
        $region29: #{tpu_custom_call.1} parent=23 // pred_check
          %p269 = pneg %p89
        $region30: #{tpu_custom_call.1} parent=23 // pred_check_branch
          %271 = sbr.rel (%p269) target = $region32
        $region31: #{tpu_custom_call.1} parent=23 // pred_region
          %s272 = sadd.s32 %s26, %s27
          %p273 = scmp.lt.s32.totalorder %s272, 1
          %s274 = scalar_select %p273, %s272, 1
          %s275 = smul.u32 3, %s274
          %s276 = ssub.s32 4, %s275
          %p277 = scmp.lt.s32.totalorder %s276, 3
          %s278 = scalar_select %p277, %s276, 3
          %s279 = smul.u32 128, %s278
          %p280 = scmp.lt.s32.totalorder %s275, 3
          %s281 = scalar_select %p280, %s275, 3
          %s282 = smul.addr %s281, 8
          %s283 = scalar_lea.vmem %s1, %s282
          %s284 = sadd.s32 %s26, %s27
          %p285 = scmp.lt.s32.totalorder %s284, 1
          %s286 = scalar_select %p285, %s284, 1
          %s287 = smul.u32 3, %s286
          %s288 = ssub.s32 4, %s287
          %p289 = scmp.lt.s32.totalorder %s288, 3
          %s290 = scalar_select %p289, %s288, 3
          %s291 = smul.u32 128, %s290
        $region32: #{tpu_custom_call.1} parent=23 // pred_fallthru
          _
        // Predicated region
        $region33: #{tpu_custom_call.1} parent=23 // pred_check
          %p292 = pneg %p121
        $region34: #{tpu_custom_call.1} parent=23 // pred_check_branch
          %294 = sbr.rel (%p292) target = $region36
        $region35: #{tpu_custom_call.1} parent=23 // pred_region
          %s295 = sadd.s32 %s26, %s27
          %p296 = scmp.lt.s32.totalorder %s295, 1
          %s297 = scalar_select %p296, %s295, 1
          %s298 = smul.u32 3, %s297
          %s299 = ssub.s32 4, %s298
          %p300 = scmp.lt.s32.totalorder %s299, 3
          %s301 = scalar_select %p300, %s299, 3
          %s302 = smul.u32 128, %s301
          %p303 = scmp.lt.s32.totalorder %s298, 3
          %s304 = scalar_select %p303, %s298, 3
          %s305 = smul.addr %s304, 8
          %s306 = scalar_lea.vmem %s2, %s305
          %s307 = sadd.s32 %s26, %s27
          %p308 = scmp.lt.s32.totalorder %s307, 1
          %s309 = scalar_select %p308, %s307, 1
          %s310 = smul.u32 3, %s309
          %s311 = ssub.s32 4, %s310
          %p312 = scmp.lt.s32.totalorder %s311, 3
          %s313 = scalar_select %p312, %s311, 3
          %s314 = smul.u32 128, %s313
        $region36: #{tpu_custom_call.1} parent=23 // pred_fallthru
          _
      $region24: #{tpu_custom_call.1} parent=5 // pred_fallthru
        _
      %p315 = scmp.le.s32.totalorder 1, %s19
      %p316 = scmp.lt.s32.totalorder %s19, 3
      %p317 = pnand %p315, %p316
      %p318 = pneg %p317
      // Predicated region
      $region37: #{tpu_custom_call.1} parent=5 // pred_check
        _
      $region38: #{tpu_custom_call.1} parent=5 // pred_check_branch
        %320 = sbr.rel (%p317) target = $region40
      $region39: #{tpu_custom_call.1} parent=5 // pred_region
        %s321 = ssub.s32 %s19, 1
        %s322 = sadd.s32 %s28, %s29
        %p323 = scmp.lt.s32.totalorder %s322, 1
        %s324 = scalar_select %p323, %s322, 1
        %s325 = smul.u32 3, %s324
        %s326 = ssub.s32 4, %s325
        %p327 = scmp.lt.s32.totalorder %s326, 3
        %s328 = scalar_select %p327, %s326, 3
        %s329 = smul.u32 128, %s328
        %p330 = scmp.lt.s32.totalorder %s325, 3
        %s331 = scalar_select %p330, %s325, 3
        %s332 = smul.addr %s331, 8
        %s333 = scalar_lea.vmem %s0, %s332
        %p334 = pneg %p63
        %p335 = pneg %p60
        %s336 = sadd.s32 %s28, %s29
        %p337 = scmp.lt.s32.totalorder %s336, 1
        %s338 = scalar_select %p337, %s336, 1
        %s339 = smul.u32 3, %s338
        %s340 = ssub.s32 4, %s339
        %p341 = scmp.lt.s32.totalorder %s340, 3
        %s342 = scalar_select %p341, %s340, 3
        %s343 = smul.u32 128, %s342
        %p344 = scmp.lt.s32.totalorder %s339, 3
        %s345 = scalar_select %p344, %s339, 3
        %s346 = smul.addr %s345, 8
        %s347 = scalar_lea.vmem %s1, %s346
        %p348 = pneg %p95
        %p349 = pneg %p92
        %s350 = sadd.s32 %s28, %s29
        %p351 = scmp.lt.s32.totalorder %s350, 1
        %s352 = scalar_select %p351, %s350, 1
        %s353 = smul.u32 3, %s352
        %s354 = ssub.s32 4, %s353
        %p355 = scmp.lt.s32.totalorder %s354, 3
        %s356 = scalar_select %p355, %s354, 3
        %s357 = smul.u32 128, %s356
        %p358 = scmp.lt.s32.totalorder %s353, 3
        %s359 = scalar_select %p358, %s353, 3
        %s360 = smul.addr %s359, 8
        %s361 = scalar_lea.vmem %s2, %s360
        %p362 = pneg %p127
        %p363 = pneg %p124
        %p364 = pneg %p148
        %p365 = pneg %p145
        %p366 = pneg %p169
        %p367 = pneg %p166
        %p368 = pneg %p195
        %p369 = pneg %p192
        %s370 = sand.u32 %s182, 1
        %s371 = scalar_lea.sflag [#allocation4], %s370
        %s372 = sand.u32 %s182, 1
        %s373 = smul.addr %s372, 8
        %s374 = scalar_lea.vmem [#allocation3], %s373
        %p375 = pneg %p221
        %p376 = pneg %p218
        %s377 = sand.u32 %s208, 1
        %s378 = scalar_lea.sflag [#allocation6], %s377
        %s379 = sand.u32 %s208, 1
        %s380 = smul.addr %s379, 8
        %s381 = scalar_lea.vmem [#allocation5], %s380
        %s382 = sadd.s32 %s28, %s29
        %p383 = scmp.lt.s32.totalorder %s382, 1
        %s384 = scalar_select %p383, %s382, 1
        %s385 = smul.u32 3, %s384
        %s386 = ssub.s32 4, %s385
        %p387 = scmp.lt.s32.totalorder %s386, 3
        %s388 = scalar_select %p387, %s386, 3
        %s389 = smul.u32 128, %s388
        %p390 = scmp.lt.s32.totalorder %s385, 3
        %s391 = scalar_select %p390, %s385, 3
        %s392 = smul.addr %s391, 8
        %s393 = scalar_lea.vmem %s0, %s392
        %s394 = sadd.s32 %s28, %s29
        %p395 = scmp.lt.s32.totalorder %s394, 1
        %s396 = scalar_select %p395, %s394, 1
        %s397 = smul.u32 3, %s396
        %s398 = ssub.s32 4, %s397
        %p399 = scmp.lt.s32.totalorder %s398, 3
        %s400 = scalar_select %p399, %s398, 3
        %s401 = smul.u32 128, %s400
        %s402 = sadd.s32 %s28, %s29
        %p403 = scmp.lt.s32.totalorder %s402, 1
        %s404 = scalar_select %p403, %s402, 1
        %s405 = smul.u32 3, %s404
        %s406 = ssub.s32 4, %s405
        %p407 = scmp.lt.s32.totalorder %s406, 3
        %s408 = scalar_select %p407, %s406, 3
        %s409 = smul.u32 128, %s408
        %p410 = scmp.lt.s32.totalorder %s405, 3
        %s411 = scalar_select %p410, %s405, 3
        %s412 = smul.addr %s411, 8
        %s413 = scalar_lea.vmem %s1, %s412
        %s414 = sadd.s32 %s28, %s29
        %p415 = scmp.lt.s32.totalorder %s414, 1
        %s416 = scalar_select %p415, %s414, 1
        %s417 = smul.u32 3, %s416
        %s418 = ssub.s32 4, %s417
        %p419 = scmp.lt.s32.totalorder %s418, 3
        %s420 = scalar_select %p419, %s418, 3
        %s421 = smul.u32 128, %s420
        %s422 = sadd.s32 %s28, %s29
        %p423 = scmp.lt.s32.totalorder %s422, 1
        %s424 = scalar_select %p423, %s422, 1
        %s425 = smul.u32 3, %s424
        %s426 = ssub.s32 4, %s425
        %p427 = scmp.lt.s32.totalorder %s426, 3
        %s428 = scalar_select %p427, %s426, 3
        %s429 = smul.u32 128, %s428
        %p430 = scmp.lt.s32.totalorder %s425, 3
        %s431 = scalar_select %p430, %s425, 3
        %s432 = smul.addr %s431, 8
        %s433 = scalar_lea.vmem %s2, %s432
        %s434 = sadd.s32 %s28, %s29
        %p435 = scmp.lt.s32.totalorder %s434, 1
        %s436 = scalar_select %p435, %s434, 1
        %s437 = smul.u32 3, %s436
        %s438 = ssub.s32 4, %s437
        %p439 = scmp.lt.s32.totalorder %s438, 3
        %s440 = scalar_select %p439, %s438, 3
        %s441 = smul.u32 128, %s440
        %p442 = scmp.eq.s32.totalorder %s29, 0
        // Predicated region
        $region41: #{tpu_custom_call.1} parent=39 // pred_check
          %p443 = pneg %p442
        $region42: #{tpu_custom_call.1} parent=39 // pred_check_branch
          %445 = sbr.rel (%p443) target = $region44
        $region43: #{tpu_custom_call.1} parent=39 // pred_region
          %vm446 = vcmask 195584
          %447 = vst.msk [vmem:[#allocation2] sm:$0xff] %vm446, 0.0
        $region44: #{tpu_custom_call.1} parent=39 // pred_fallthru
          _
        %s448 = sadd.s32 %s28, %s29
        %s449 = smul.u32 %s448, 24
        %s450 = ssub.s32 26, %s449
        %v451 = vlaneseq
        %v452 = vshrl.u32 %v451, 7
        %v453 = vadd.s32 %v452, 8
        %v454 = vadd.s32 %v452, 16
        %v455 = vstv %s450
        %vm456 = vcmp.lt.s32.totalorder %v452, %v455
        %vm457 = vcmp.lt.s32.totalorder %v453, %v455
        %vm458 = vcmp.lt.s32.totalorder %v454, %v455
        %v459 = vld [vmem:[%s393] sm:$0xff]
        %v460 = vld [vmem:[%s393 + $0x8] sm:$0xff]
        %v461 = vld [vmem:[%s393 + $0x10] sm:$0xff]
        %v462 = vld [vmem:[%s413] sm:$0xff]
        %v463 = vld [vmem:[%s413 + $0x8] sm:$0xff]
        %v464 = vld [vmem:[%s413 + $0x10] sm:$0xff]
        %v465 = vld [vmem:[%s433] sm:$0xff]
        %v466 = vld [vmem:[%s433 + $0x8] sm:$0xff]
        %v467 = vld [vmem:[%s433 + $0x10] sm:$0xff]
        %v468 = vsub.f32 %v459, %v465
        %v469 = vsub.f32 %v460, %v466
        %v470 = vsub.f32 %v461, %v467
        %v471 = vsub.f32 %v462, %v465
        %v472 = vsub.f32 %v463, %v466
        %v473 = vsub.f32 %v464, %v467
        %v474 = vmul.f32 %v468, %v468
        %v475 = vmul.f32 %v469, %v469
        %v476 = vmul.f32 %v470, %v470
        %v477 = vmul.f32 %v471, %v471
        %v478 = vmul.f32 %v472, %v472
        %v479 = vmul.f32 %v473, %v473
        %v480 = vadd.f32 %v474, %v477
        %v481 = vadd.f32 %v475, %v478
        %v482 = vadd.f32 %v476, %v479
        %v483 = vsel %vm456, 1, 0
        %v484 = vsel %vm457, 1, 0
        %v485 = vsel %vm458, 1, 0
        %vm486 = vcmp.eq.s32.totalorder %v483, 1
        %vm487 = vcmp.eq.s32.totalorder %v484, 1
        %vm488 = vcmp.eq.s32.totalorder %v485, 1
        %v489 = vsel %vm486, %v480, 0.0
        %v490 = vsel %vm487, %v481, 0.0
        %v491 = vsel %vm488, %v482, 0.0
        %v492 = vld [vmem:[#allocation2] sm:$0xff]
        %vm493 = vcmask 195584
        %v494 = vsel %vm493, %v489, 0.0
        %v495 = vsel %vm493, %v490, 0.0
        %v496 = vadd.f32 %v494, %v495
        %v497 = vsel %vm493, %v491, 0.0
        %v498 = vadd.f32 %v496, %v497
        %v499 = vadd.f32 %v492, %v498
        %500 = vst.msk [vmem:[#allocation2] sm:$0xff] %vm493, %v499
        // Predicated region
        $region45: #{tpu_custom_call.1} parent=39 // pred_check
          %p501 = pneg %p442
        $region46: #{tpu_custom_call.1} parent=39 // pred_check_branch
          %503 = sbr.rel (%p501) target = $region48
        $region47: #{tpu_custom_call.1} parent=39 // pred_region
          %v504 = vld [vmem:[#allocation2] sm:$0xff]
          %505 = vst.msk [vmem:[%s374] sm:$0xff] %vm493, %v504
          %v506 = vld [vmem:[%s3] sm:$0x3]
          %v507 = vld [vmem:[%s4] sm:$0x3]
          %v508 = vmax.f32 %v506, 0.0
          %v509 = vmul.f32 %v506, %v507
          %v510 = vsub.f32 %v508, %v509
          %v511 = vand.u32 2147483647, %v506
          %v512 = vsub.f32 0.0, %v511
          %v513 = vmul.f32 %v512, 1.442695
          %v514 = vpow.pop %v513
          %v515 = vadd.f32 %v514, 1.0
          %v516 = vlog2.pop %v515
          %v517 = vmul.f32 %v516, 0.6931472
          %v518 = vmul.f32 -0.5, %v514
          %v519 = vadd.f32 %v518, 1.0
          %v520 = vmul.f32 %v519, %v514
          %v521 = vand.u32 2147483647, %v514
          %vm522 = vcmp.lt.f32.partialorder %v521, 0.0004427343
          %v523 = vsel %vm522, %v520, %v517
          %v524 = vadd.f32 %v510, %v523
          %vm525 = vcmask 189440
          %v526 = vsel %vm525, %v524, 0.0
          %527 = vadd.xlane.f32.xlu0 %v526
          %v528 = vpop.xlane.xlu0 %527
          %v529 = vrot.slane %v528, 4
          %v530 = vadd.f32 %v528, %v529
          %v531 = vrot.slane %v530, 2
          %v532 = vadd.f32 %v530, %v531
          %v533 = vrot.slane %v532, 1
          %v534 = vadd.f32 %v532, %v533
          %s535 = vtos %v534
          %v536 = vstv %s535
          %537 = vst [vmem:[%s381] sm:$0xff] %v536
        $region48: #{tpu_custom_call.1} parent=39 // pred_fallthru
          _
        %s538 = sand.u32 %s182, 1
        %s539 = scalar_lea.sflag [#allocation4], %s538
        %s540 = sand.u32 %s182, 1
        %s541 = smul.addr %s540, 8
        %s542 = scalar_lea.vmem [#allocation3], %s541
        %s543 = sand.u32 %s208, 1
        %s544 = scalar_lea.sflag [#allocation6], %s543
        %s545 = sand.u32 %s208, 1
        %s546 = smul.addr %s545, 8
        %s547 = scalar_lea.vmem [#allocation5], %s546
        // Predicated region
        $region49: #{tpu_custom_call.1} parent=39 // pred_check
          %p548 = pneg %p192
        $region50: #{tpu_custom_call.1} parent=39 // pred_check_branch
          %550 = sbr.rel (%p548) target = $region52
        $region51: #{tpu_custom_call.1} parent=39 // pred_region
          %s552 = ssub.s32 128, 128
          %553 = vsyncadd %s539, %s552
          %s554 = smul.addr %s28, 128
          %s555 = scalar_lea.hbm %s5, %s554
          %s557 = sshll.u32 %s542, 4
          %s558 = int_to_ptr.vmem [resolvable:$true] %s557
          %560 = dma.vmem_to_hbm [thread:$0]  %s558, 128, %s555, %s539
        $region52: #{tpu_custom_call.1} parent=39 // pred_fallthru
          _
        // Predicated region
        $region53: #{tpu_custom_call.1} parent=39 // pred_check
          %p561 = pneg %p218
        $region54: #{tpu_custom_call.1} parent=39 // pred_check_branch
          %563 = sbr.rel (%p561) target = $region56
        $region55: #{tpu_custom_call.1} parent=39 // pred_region
          %s565 = ssub.s32 128, 128
          %566 = vsyncadd %s544, %s565
          %s567 = smul.addr %s28, 128
          %s568 = scalar_lea.hbm %s6, %s567
          %s570 = sshll.u32 %s547, 4
          %s571 = int_to_ptr.vmem [resolvable:$true] %s570
          %573 = dma.vmem_to_hbm [thread:$0]  %s571, 128, %s568, %s544
        $region56: #{tpu_custom_call.1} parent=39 // pred_fallthru
          _
      $region40: #{tpu_custom_call.1} parent=5 // pred_fallthru
        _
      %p574 = scmp.le.s32.totalorder 2, %s19
      // Predicated region
      $region57: #{tpu_custom_call.1} parent=5 // pred_check
        %p575 = pneg %p574
      $region58: #{tpu_custom_call.1} parent=5 // pred_check_branch
        %577 = sbr.rel (%p575) target = $region60
      $region59: #{tpu_custom_call.1} parent=5 // pred_region
        %s578 = ssub.s32 %s19, 2
        // Predicated region
        $region61: #{tpu_custom_call.1} parent=59 // pred_check
          %p579 = pneg %p198
        $region62: #{tpu_custom_call.1} parent=59 // pred_check_branch
          %581 = sbr.rel (%p579) target = $region64
        $region63: #{tpu_custom_call.1} parent=59 // pred_region
          %s582 = sand.u32 %s183, 1
          %s583 = scalar_lea.sflag [#allocation4], %s582
          %s584 = sand.u32 %s183, 1
          %s585 = smul.addr %s584, 8
          %s586 = scalar_lea.vmem [#allocation3], %s585
          %587 = dma.done %s583, 128
        $region64: #{tpu_custom_call.1} parent=59 // pred_fallthru
          _
        // Predicated region
        $region65: #{tpu_custom_call.1} parent=59 // pred_check
          %p588 = pneg %p224
        $region66: #{tpu_custom_call.1} parent=59 // pred_check_branch
          %590 = sbr.rel (%p588) target = $region68
        $region67: #{tpu_custom_call.1} parent=59 // pred_region
          %s591 = sand.u32 %s209, 1
          %s592 = scalar_lea.sflag [#allocation6], %s591
          %s593 = sand.u32 %s209, 1
          %s594 = smul.addr %s593, 8
          %s595 = scalar_lea.vmem [#allocation5], %s594
          %596 = dma.done %s592, 128
        $region68: #{tpu_custom_call.1} parent=59 // pred_fallthru
          _
      $region60: #{tpu_custom_call.1} parent=5 // pred_fallthru
        _
    $region6: #{tpu_custom_call.1} parent=1 // loop_footer
      %s23 = sadd.s32 1, %s19
    $region7: #{tpu_custom_call.1} parent=1 // loop_footer_branch
      %18 = sbr.rel target = $region3
    $region8: #{tpu_custom_call.1} parent=1 // loop_exit
      _
    %597 = vsyncpa [#allocation4], 1
    %s598 = scalar_lea.sflag [#allocation4], 1
    %599 = vsyncpa %s598, 1
    %600 = vsyncpa [#allocation6], 1
    %s601 = scalar_lea.sflag [#allocation6], 1
    %602 = vsyncpa %s601, 1

</llo_original>
